<compile_context>
chip_gen: v5e
topology: v5e:2x2
jax: 0.10.0
libtpu: 0.0.40
codegen_flags: <defaults>
</compile_context>

<pallas_src>
import math
from typing import NamedTuple

import numpy as np

import jax
import jax.numpy as jnp
from jax.experimental import pallas as pl
from jax.experimental.pallas import tpu as pltpu


def _round_up(x, m):
    return (x + m - 1) // m * m


# ---------------------------------------------------------------------------
# Kernels
# ---------------------------------------------------------------------------

def projector_kernel(x_ref, w1_ref, b1_ref, w2_ref, b2_ref, o_ref):
    """All-resident path: full weights in VMEM, (tm, *) batch tiles streamed."""
    # Hidden layer: x @ W1 + b1, ReLU  (bf16 MXU, f32 accumulation).
    h = jnp.dot(x_ref[...], w1_ref[...], preferred_element_type=jnp.float32)
    h = jnp.maximum(h + b1_ref[...], 0.0).astype(jnp.bfloat16)

    # Output projection: h @ W2 + b2.
    y = jnp.dot(h, w2_ref[...], preferred_element_type=jnp.float32)
    y = y + b2_ref[...]

    # L2 normalize along last dim.  torch F.normalize(p=2, eps=1e-12) clamps the norm:
    #   max(||y||, eps) == sqrt(max(sum(y^2), eps^2)); rsqrt runs on the EUP slot.
    sumsq = jnp.sum(y * y, axis=-1, keepdims=True)
    inv = jax.lax.rsqrt(jnp.maximum(sumsq, 1e-24))
    o_ref[...] = (y * inv).astype(o_ref.dtype)


def projector_kernel_chunked(x_ref, w1_ref, b1_ref, w2_ref, b2_ref, o_ref, acc_ref):
    """dh-chunked path: grid=(batch tiles, dh chunks); accumulate h@W2 chunks in f32."""
    j = pl.program_id(1)

    @pl.when(j == 0)
    def _():
        acc_ref[...] = jnp.zeros_like(acc_ref)

    # h chunk: x @ W1[:, chunk] + b1[chunk], ReLU.  Padded chunks are exactly zero.
    h = jnp.dot(x_ref[...], w1_ref[...], preferred_element_type=jnp.float32)
    h = jnp.maximum(h + b1_ref[...], 0.0).astype(jnp.bfloat16)
    acc_ref[...] += jnp.dot(h, w2_ref[...], preferred_element_type=jnp.float32)

    @pl.when(j == pl.num_programs(1) - 1)
    def _():
        y = acc_ref[...] + b2_ref[...]
        sumsq = jnp.sum(y * y, axis=-1, keepdims=True)
        inv = jax.lax.rsqrt(jnp.maximum(sumsq, 1e-24))
        o_ref[...] = (y * inv).astype(o_ref.dtype)


# ---------------------------------------------------------------------------
# Hardware defaults
# ---------------------------------------------------------------------------

def _tpu_defaults():
    """Per-generation batch-tile target and per-core VMEM capacity (conservative)."""
    kind = ""
    try:
        kind = jax.devices()[0].device_kind.lower()
    except Exception:
        pass
    vmem = None
    try:
        vmem = int(pltpu.get_tpu_info().vmem_capacity_bytes)
    except Exception:
        vmem = None
    is_v5e = ("v5 lite" in kind) or ("v5e" in kind) or ("v5litepod" in kind)
    is_v6 = ("v6" in kind) or ("trillium" in kind)
    is_v7 = "v7" in kind
    if vmem is None:
        # v5e / v6e have 128 MiB per core; v7x only 64 MiB; unknown -> conservative.
        vmem = (128 << 20) if (is_v5e or is_v6) else (64 << 20)
    tm_target = 128 if is_v5e else 256   # 128x128 MXU + 1 vst slot + small scoped VMEM on v5e
    return {"tm_target": tm_target, "vmem_bytes": vmem,
            "is_v5e": is_v5e, "is_v6": is_v6, "is_v7": is_v7}


# ---------------------------------------------------------------------------
# Parameter preparation (pad/cast ONCE, outside the per-call path)
# ---------------------------------------------------------------------------

class ProjectorParams(NamedTuple):
    w1: jax.Array   # (dk, dh) bf16, zero-padded
    b1: jax.Array   # (1, dh)  f32, zero-padded
    w2: jax.Array   # (dh, dn) bf16, zero-padded
    b2: jax.Array   # (1, dn)  f32, zero-padded
    d_img: int
    h_dim: int
    d_txt: int


def _pad2d(a, rows, cols, dtype):
    a = jnp.asarray(a)
    if a.shape == (rows, cols) and a.dtype == dtype:
        return a
    out = jnp.zeros((rows, cols), dtype)
    return out.at[: a.shape[0], : a.shape[1]].set(a.astype(dtype))


def prepare_projector_params(w1, b1, w2, b2):
    """Pad every feature axis to a multiple of 128 and cast weights to bf16, once."""
    d_img, h_dim = w1.shape
    d_txt = w2.shape[1]
    dk, dh, dn = _round_up(d_img, 128), _round_up(h_dim, 128), _round_up(d_txt, 128)
    return ProjectorParams(
        w1=_pad2d(w1, dk, dh, jnp.bfloat16),
        b1=_pad2d(jnp.reshape(b1, (1, -1)), 1, dh, jnp.float32),
        w2=_pad2d(w2, dh, dn, jnp.bfloat16),
        b2=_pad2d(jnp.reshape(b2, (1, -1)), 1, dn, jnp.float32),
        d_img=d_img, h_dim=h_dim, d_txt=d_txt,
    )


# ---------------------------------------------------------------------------
# pallas_call wrappers
# ---------------------------------------------------------------------------

def _call_resident(xp, params, tm, b_pad, dk, dh, dn, out_dtype, vmem_cap):
    grid = (b_pad // tm,)
    out_itemsize = np.dtype(out_dtype).itemsize
    w_bytes = (params.w1.size * 2 + params.w2.size * 2
               + params.b1.size * 4 + params.b2.size * 4)
    flops = 2 * b_pad * (dk * dh + dh * dn)
    bytes_accessed = (xp.size * 2 + w_bytes + b_pad * dn * out_itemsize)

    def build(single_buffer_weights):
        w_copies = 1 if single_buffer_weights else 2
        need = (w_copies * w_bytes            # resident weights/biases
                + 2 * tm * dk * 2             # x tile, double-buffered bf16
                + 2 * tm * dn * out_itemsize  # out tile, double-buffered
                + tm * dh * (4 + 2)           # h temporaries (f32 + bf16)
                + tm * dn * 4)                # y f32 temporary
        vmem_limit = int(min(max(need * 1.25, 32 << 20), vmem_cap - (2 << 20)))

        if single_buffer_weights and hasattr(pl, "Buffered"):
            res = dict(pipeline_mode=pl.Buffered(1))   # constant index_map: no prefetch needed
        else:
            res = {}
        in_specs = [
            pl.BlockSpec((tm, dk), lambda i: (i, 0)),          # x: streamed per batch tile
            pl.BlockSpec((dk, dh), lambda i: (0, 0), **res),   # W1: resident
            pl.BlockSpec((1, dh), lambda i: (0, 0), **res),    # b1: resident
            pl.BlockSpec((dh, dn), lambda i: (0, 0), **res),   # W2: resident
            pl.BlockSpec((1, dn), lambda i: (0, 0), **res),    # b2: resident
        ]
        return pl.pallas_call(
            projector_kernel,
            out_shape=jax.ShapeDtypeStruct((b_pad, dn), out_dtype),
            grid=grid,
            in_specs=in_specs,
            out_specs=pl.BlockSpec((tm, dn), lambda i: (i, 0)),
            compiler_params=pltpu.CompilerParams(
                dimension_semantics=("parallel",),
                vmem_limit_bytes=vmem_limit),
            cost_estimate=pl.CostEstimate(
                flops=flops, transcendentals=b_pad, bytes_accessed=bytes_accessed),
        )

    args = (xp, params.w1, params.b1, params.w2, params.b2)
    try:
        return build(True)(*args)
    except Exception:
        # Fallback for jax versions where Buffered(1) single-buffering is rejected:
        # default double-buffered weights (correct, just more VMEM).
        return build(False)(*args)


def _call_chunked(xp, params, tm, b_pad, dk, dh, dn, out_dtype, chunk_h, vmem_cap):
    out_itemsize = np.dtype(out_dtype).itemsize
    # Chunk size along dh: largest 128-multiple divisor of dh (<= 512), so no re-padding.
    if chunk_h is not None and dh % chunk_h == 0 and chunk_h % 128 == 0:
        tk_h = chunk_h
    else:
        tk_h = 128
        for cand in (512, 384, 256, 128):
            if dh % cand == 0:
                tk_h = cand
                break
    n_h = dh // tk_h
    grid = (b_pad // tm, n_h)

    w_bytes = (params.w1.size * 2 + params.w2.size * 2
               + params.b1.size * 4 + params.b2.size * 4)
    flops = 2 * b_pad * (dk * dh + dh * dn)
    bytes_accessed = xp.size * 2 + w_bytes + b_pad * dn * out_itemsize

    need = (2 * (dk * tk_h * 2 + tk_h * 4 + tk_h * dn * 2)  # streamed W1/b1/W2 chunks (x2 bufs)
            + 2 * dn * 4                                    # b2
            + 2 * tm * dk * 2                               # x tile
            + 2 * tm * dn * out_itemsize                    # out tile
            + tm * dn * 4                                   # f32 accumulator scratch
            + tm * tk_h * (4 + 2))                          # h temporaries
    vmem_limit = int(min(max(need * 1.25, 32 << 20), vmem_cap - (2 << 20)))

    return pl.pallas_call(
        projector_kernel_chunked,
        out_shape=jax.ShapeDtypeStruct((b_pad, dn), out_dtype),
        grid=grid,
        in_specs=[
            pl.BlockSpec((tm, dk), lambda i, j: (i, 0)),    # x tile: resident across dh chunks
            pl.BlockSpec((dk, tk_h), lambda i, j: (0, j)),  # W1 chunk
            pl.BlockSpec((1, tk_h), lambda i, j: (0, j)),   # b1 chunk
            pl.BlockSpec((tk_h, dn), lambda i, j: (j, 0)),  # W2 chunk
            pl.BlockSpec((1, dn), lambda i, j: (0, 0)),     # b2
        ],
        out_specs=pl.BlockSpec((tm, dn), lambda i, j: (i, 0)),
        scratch_shapes=[pltpu.VMEM((tm, dn), jnp.float32)],
        compiler_params=pltpu.CompilerParams(
            dimension_semantics=("parallel", "arbitrary"),
            vmem_limit_bytes=vmem_limit),
        cost_estimate=pl.CostEstimate(
            flops=flops, transcendentals=b_pad, bytes_accessed=bytes_accessed),
    )(xp, params.w1, params.b1, params.w2, params.b2)


def multimodal_projector_apply(x, params, *, tm_target=None, out_dtype=jnp.float32,
                               force_chunked=False, chunk_h=None):
    """x:[B, d_img] -> [B, d_txt] (out_dtype), using pre-padded ProjectorParams."""
    B, d_img = x.shape
    assert d_img == params.d_img, (d_img, params.d_img)
    dk, dh = params.w1.shape
    dn = params.w2.shape[1]
    out_itemsize = np.dtype(out_dtype).itemsize

    hw = _tpu_defaults()
    vmem_cap = hw["vmem_bytes"]
    if tm_target is None:
        tm_target = hw["tm_target"]
        w_bytes = (params.w1.size * 2 + params.w2.size * 2
                   + params.b1.size * 4 + params.b2.size * 4)
        # v6e: 128 MiB VMEM + ~0.35us/step overhead -> bigger batch tiles when weights are small.
        if hw["is_v6"] and w_bytes <= (8 << 20):
            tm_target = 512

    # Batch tile selection.
    if B >= 256:
        # Guarantee >= 2 grid steps so both v7x TensorCores get work (no-op on v5e/v6e).
        tm = min(tm_target, max(128, (_round_up(B, 128) // 2 // 128) * 128))
    elif B >= tm_target:
        tm = tm_target
    else:
        tm = _round_up(B, 16)   # bf16 packs 2 rows/sublane -> native (16, 128) tile
    b_pad = _round_up(B, tm)

    # Pad/cast x per call; skip the copy entirely when already aligned.
    if x.shape == (b_pad, dk) and x.dtype == jnp.bfloat16:
        xp = x
    else:
        xp = jnp.zeros((b_pad, dk), jnp.bfloat16).at[:B, :d_img].set(x.astype(jnp.bfloat16))

    # Path selection: resident weights if they fit comfortably in per-core VMEM.
    w_bytes = (params.w1.size * 2 + params.w2.size * 2
               + params.b1.size * 4 + params.b2.size * 4)
    resident_need = (w_bytes + 2 * tm * dk * 2 + 2 * tm * dn * out_itemsize
                     + tm * dh * (4 + 2) + tm * dn * 4)
    use_chunked = force_chunked or (resident_need > int(0.6 * vmem_cap))

    if use_chunked:
        out = _call_chunked(xp, params, tm, b_pad, dk, dh, dn, out_dtype, chunk_h, vmem_cap)
    else:
        out = _call_resident(xp, params, tm, b_pad, dk, dh, dn, out_dtype, vmem_cap)
    return out[:B, :params.d_txt]


def multimodal_projector(x, w1, b1, w2, b2, **kwargs):
    """Convenience wrapper (pads weights per call); prefer prepare_projector_params + apply."""
    return multimodal_projector_apply(x, prepare_projector_params(w1, b1, w2, b2), **kwargs)


def kaiming_uniform(key, fan_in, shape):
    # nn.init.kaiming_uniform_(..., nonlinearity='relu'):
    #   gain = sqrt(2), bound = gain * sqrt(3 / fan_in) = sqrt(6 / fan_in)
    bound = math.sqrt(6.0 / fan_in)
    return jax.random.uniform(key, shape, dtype=jnp.float32, minval=-bound, maxval=bound)


if __name__ == "__main__":
    # Shapes consistent with the module's forward: image_embeddings [batch, image_embedding_dim].
    batch = 8
    image_embedding_dim = 64
    hidden_dim = 256
    text_embedding_dim = 32

    key = jax.random.PRNGKey(0)
    k_x, k_w1, k_w2 = jax.random.split(key, 3)

    x = jax.random.normal(k_x, (batch, image_embedding_dim), dtype=jnp.float32)

    # Deterministic synthetic init mirroring _initialize_weights:
    # kaiming-uniform weights (fan_in = input features), zero biases.
    w1 = kaiming_uniform(k_w1, image_embedding_dim, (image_embedding_dim, hidden_dim))
    b1 = jnp.zeros((hidden_dim,), dtype=jnp.float32)
    w2 = kaiming_uniform(k_w2, hidden_dim, (hidden_dim, text_embedding_dim))
    b2 = jnp.zeros((text_embedding_dim,), dtype=jnp.float32)

    # Pad / cast weights ONCE (not per call).
    params = prepare_projector_params(w1, b1, w2, b2)

    # Resident-weights path.
    out = jax.block_until_ready(multimodal_projector_apply(x, params))
    assert out.shape == (batch, text_embedding_dim)

    # dh-chunked fallback path (used automatically when resident weights would blow
    # per-core VMEM, e.g. SigLIP/CLIP-scale projectors on v7x); force it here so both
    # paths are exercised at small shapes.
    out_chunked = jax.block_until_ready(
        multimodal_projector_apply(x, params, force_chunked=True, chunk_h=128))

    # Reference with the same bf16-matmul / f32-accumulate numerics as the kernel.
    h_ref = jnp.maximum(
        jnp.dot(x.astype(jnp.bfloat16), w1.astype(jnp.bfloat16),
                preferred_element_type=jnp.float32) + b1[None, :], 0.0).astype(jnp.bfloat16)
    y_ref = jnp.dot(h_ref, w2.astype(jnp.bfloat16),
                    preferred_element_type=jnp.float32) + b2[None, :]
    y_ref = y_ref * jax.lax.rsqrt(
        jnp.maximum(jnp.sum(y_ref * y_ref, axis=-1, keepdims=True), 1e-24))
    assert jnp.allclose(out, y_ref, atol=2e-3, rtol=2e-3), \
        float(jnp.max(jnp.abs(out - y_ref)))
    assert jnp.allclose(out_chunked, y_ref, atol=2e-3, rtol=2e-3), \
        float(jnp.max(jnp.abs(out_chunked - y_ref)))

    # Loose sanity check against the full-f32 torch-equivalent math.
    h32 = jnp.maximum(x @ w1 + b1[None, :], 0.0)
    y32 = h32 @ w2 + b2[None, :]
    y32 = y32 / jnp.maximum(jnp.sqrt(jnp.sum(y32 * y32, axis=-1, keepdims=True)), 1e-12)
    assert jnp.allclose(out, y32, atol=5e-2), float(jnp.max(jnp.abs(out - y32)))

    # Optional bf16 output (halves HBM writeback; post-norm values are in [-1, 1]).
    out_bf16 = jax.block_until_ready(
        multimodal_projector_apply(x, params, out_dtype=jnp.bfloat16))
    assert jnp.allclose(out_bf16.astype(jnp.float32), out, atol=1e-2)

    print("KERNEL_OK")
</pallas_src>

<mosaic_0001>
module attributes {stable_mosaic.version = 11 : i64} {
  func.func @projector_kernel(%arg0: i32, %arg1: memref<16x128xbf16, #tpu.memory_space<vmem>>, %arg2: memref<128x256xbf16, #tpu.memory_space<vmem>>, %arg3: memref<1x256xf32, #tpu.memory_space<vmem>>, %arg4: memref<256x128xbf16, #tpu.memory_space<vmem>>, %arg5: memref<1x128xf32, #tpu.memory_space<vmem>>, %arg6: memref<16x128xf32, #tpu.memory_space<vmem>>) attributes {dimension_semantics = [#tpu.dimension_semantics<parallel>], iteration_bounds = array<i64: 1>, scalar_prefetch = 0 : i64, scratch_operands = 0 : i64, tpu.core_type = #tpu.core_type<tc>, window_params = [{transform_indices = @transform_0, window_bounds = array<i64: 16, 128>}, {pipeline_mode = #tpu.pipeline_mode<synchronous>, transform_indices = @transform_1, window_bounds = array<i64: 128, 256>}, {pipeline_mode = #tpu.pipeline_mode<synchronous>, transform_indices = @transform_2, window_bounds = array<i64: 1, 256>}, {pipeline_mode = #tpu.pipeline_mode<synchronous>, transform_indices = @transform_3, window_bounds = array<i64: 256, 128>}, {pipeline_mode = #tpu.pipeline_mode<synchronous>, transform_indices = @transform_4, window_bounds = array<i64: 1, 128>}, {transform_indices = @transform_5, window_bounds = array<i64: 16, 128>}]} {
    %c0 = arith.constant 0 : index
    %c0_0 = arith.constant 0 : index
    %0 = vector.load %arg1[%c0, %c0_0] : memref<16x128xbf16, #tpu.memory_space<vmem>>, vector<16x128xbf16>
    %c0_1 = arith.constant 0 : index
    %c0_2 = arith.constant 0 : index
    %1 = vector.load %arg2[%c0_1, %c0_2] : memref<128x256xbf16, #tpu.memory_space<vmem>>, vector<128x256xbf16>
    %cst = arith.constant dense<0.000000e+00> : vector<16x256xf32>
    %2 = tpu.matmul %0, %1, %cst {dimension_numbers = #tpu.dot_dimension_numbers<[1], [0], [0], [1], [0, 0, 1, 1], [], []>} : vector<16x128xbf16>, vector<128x256xbf16>, vector<16x256xf32> -> vector<16x256xf32>
    %c0_3 = arith.constant 0 : index
    %c0_4 = arith.constant 0 : index
    %3 = vector.load %arg3[%c0_3, %c0_4] : memref<1x256xf32, #tpu.memory_space<vmem>>, vector<1x256xf32>
    %4 = vector.broadcast %3 : vector<1x256xf32> to vector<16x256xf32>
    %5 = arith.addf %2, %4 : vector<16x256xf32>
    %cst_5 = arith.constant 0.000000e+00 : f32
    %6 = vector.broadcast %cst_5 : f32 to vector<16x256xf32>
    %7 = arith.maximumf %5, %6 : vector<16x256xf32>
    %8 = arith.truncf %7 : vector<16x256xf32> to vector<16x256xbf16>
    %c0_6 = arith.constant 0 : index
    %c0_7 = arith.constant 0 : index
    %9 = vector.load %arg4[%c0_6, %c0_7] : memref<256x128xbf16, #tpu.memory_space<vmem>>, vector<256x128xbf16>
    %cst_8 = arith.constant dense<0.000000e+00> : vector<16x128xf32>
    %10 = tpu.matmul %8, %9, %cst_8 {dimension_numbers = #tpu.dot_dimension_numbers<[1], [0], [0], [1], [0, 0, 1, 1], [], []>} : vector<16x256xbf16>, vector<256x128xbf16>, vector<16x128xf32> -> vector<16x128xf32>
    %c0_9 = arith.constant 0 : index
    %c0_10 = arith.constant 0 : index
    %11 = vector.load %arg5[%c0_9, %c0_10] : memref<1x128xf32, #tpu.memory_space<vmem>>, vector<1x128xf32>
    %12 = vector.broadcast %11 : vector<1x128xf32> to vector<16x128xf32>
    %13 = arith.addf %10, %12 : vector<16x128xf32>
    %14 = arith.mulf %13, %13 : vector<16x128xf32>
    %cst_11 = arith.constant dense<0.000000e+00> : vector<16xf32>
    %15 = vector.multi_reduction <add>, %14, %cst_11 [1] : vector<16x128xf32> to vector<16xf32>
    %16 = vector.shape_cast %15 : vector<16xf32> to vector<16x1xf32>
    %cst_12 = arith.constant 1.000000e-24 : f32
    %17 = vector.broadcast %cst_12 : f32 to vector<16x1xf32>
    %18 = arith.maximumf %16, %17 : vector<16x1xf32>
    %19 = math.rsqrt %18 : vector<16x1xf32>
    %20 = vector.broadcast %19 : vector<16x1xf32> to vector<16x128xf32>
    %21 = arith.mulf %13, %20 : vector<16x128xf32>
    %c0_13 = arith.constant 0 : index
    %c0_14 = arith.constant 0 : index
    %22 = vector.load %arg6[%c0_13, %c0_14] : memref<16x128xf32, #tpu.memory_space<vmem>>, vector<16x128xf32>
    tpu.vector_store %arg6[%c0_13, %c0_14], %21 {strides = array<i32>} : memref<16x128xf32, #tpu.memory_space<vmem>>, vector<16x128xf32>,
    return
  }
  func.func @transform_0(%arg0: i32) -> (i32, i32) {
    %c0_i32 = arith.constant 0 : i32
    %c0_i32_0 = arith.constant 0 : i32
    return %arg0, %c0_i32 : i32, i32
  }
  func.func @transform_1(%arg0: i32) -> (i32, i32) {
    %c0_i32 = arith.constant 0 : i32
    %c0_i32_0 = arith.constant 0 : i32
    %c0_i32_1 = arith.constant 0 : i32
    return %c0_i32, %c0_i32_0 : i32, i32
  }
  func.func @transform_2(%arg0: i32) -> (i32, i32) {
    %c0_i32 = arith.constant 0 : i32
    %c0_i32_0 = arith.constant 0 : i32
    %c0_i32_1 = arith.constant 0 : i32
    return %c0_i32, %c0_i32_0 : i32, i32
  }
  func.func @transform_3(%arg0: i32) -> (i32, i32) {
    %c0_i32 = arith.constant 0 : i32
    %c0_i32_0 = arith.constant 0 : i32
    %c0_i32_1 = arith.constant 0 : i32
    return %c0_i32, %c0_i32_0 : i32, i32
  }
  func.func @transform_4(%arg0: i32) -> (i32, i32) {
    %c0_i32 = arith.constant 0 : i32
    %c0_i32_0 = arith.constant 0 : i32
    %c0_i32_1 = arith.constant 0 : i32
    return %c0_i32, %c0_i32_0 : i32, i32
  }
  func.func @transform_5(%arg0: i32) -> (i32, i32) {
    %c0_i32 = arith.constant 0 : i32
    %c0_i32_0 = arith.constant 0 : i32
    return %arg0, %c0_i32 : i32, i32
  }
}

module attributes {stable_mosaic.version = 11 : i64} {
  func.func @projector_kernel(%arg0: i32, %arg1: memref<16x128xbf16, #tpu.memory_space<vmem>>, %arg2: memref<128x256xbf16, #tpu.memory_space<vmem>>, %arg3: memref<1x256xf32, #tpu.memory_space<vmem>>, %arg4: memref<256x128xbf16, #tpu.memory_space<vmem>>, %arg5: memref<1x128xf32, #tpu.memory_space<vmem>>, %arg6: memref<16x128xf32, #tpu.memory_space<vmem>>) attributes {dimension_semantics = [#tpu.dimension_semantics<parallel>], iteration_bounds = array<i64: 1>, scalar_prefetch = 0 : i64, scratch_operands = 0 : i64, tpu.core_type = #tpu.core_type<tc>, window_params = [{transform_indices = @transform_0, window_bounds = array<i64: 16, 128>}, {pipeline_mode = #tpu.pipeline_mode<synchronous>, transform_indices = @transform_1, window_bounds = array<i64: 128, 256>}, {pipeline_mode = #tpu.pipeline_mode<synchronous>, transform_indices = @transform_2, window_bounds = array<i64: 1, 256>}, {pipeline_mode = #tpu.pipeline_mode<synchronous>, transform_indices = @transform_3, window_bounds = array<i64: 256, 128>}, {pipeline_mode = #tpu.pipeline_mode<synchronous>, transform_indices = @transform_4, window_bounds = array<i64: 1, 128>}, {transform_indices = @transform_5, window_bounds = array<i64: 16, 128>}]} {
    %c0 = arith.constant 0 : index
    %c0_0 = arith.constant 0 : index
    %0 = vector.load %arg1[%c0, %c0_0] : memref<16x128xbf16, #tpu.memory_space<vmem>>, vector<16x128xbf16>
    %c0_1 = arith.constant 0 : index
    %c0_2 = arith.constant 0 : index
    %1 = vector.load %arg2[%c0_1, %c0_2] : memref<128x256xbf16, #tpu.memory_space<vmem>>, vector<128x256xbf16>
    %cst = arith.constant dense<0.000000e+00> : vector<16x256xf32>
    %2 = tpu.matmul %0, %1, %cst {dimension_numbers = #tpu.dot_dimension_numbers<[1], [0], [0], [1], [0, 0, 1, 1], [], []>} : vector<16x128xbf16>, vector<128x256xbf16>, vector<16x256xf32> -> vector<16x256xf32>
    %c0_3 = arith.constant 0 : index
    %c0_4 = arith.constant 0 : index
    %3 = vector.load %arg3[%c0_3, %c0_4] : memref<1x256xf32, #tpu.memory_space<vmem>>, vector<1x256xf32>
    %4 = vector.broadcast %3 : vector<1x256xf32> to vector<16x256xf32>
    %5 = arith.addf %2, %4 : vector<16x256xf32>
    %cst_5 = arith.constant 0.000000e+00 : f32
    %6 = vector.broadcast %cst_5 : f32 to vector<16x256xf32>
    %7 = arith.maximumf %5, %6 : vector<16x256xf32>
    %8 = arith.truncf %7 : vector<16x256xf32> to vector<16x256xbf16>
    %c0_6 = arith.constant 0 : index
    %c0_7 = arith.constant 0 : index
    %9 = vector.load %arg4[%c0_6, %c0_7] : memref<256x128xbf16, #tpu.memory_space<vmem>>, vector<256x128xbf16>
    %cst_8 = arith.constant dense<0.000000e+00> : vector<16x128xf32>
    %10 = tpu.matmul %8, %9, %cst_8 {dimension_numbers = #tpu.dot_dimension_numbers<[1], [0], [0], [1], [0, 0, 1, 1], [], []>} : vector<16x256xbf16>, vector<256x128xbf16>, vector<16x128xf32> -> vector<16x128xf32>
    %c0_9 = arith.constant 0 : index
    %c0_10 = arith.constant 0 : index
    %11 = vector.load %arg5[%c0_9, %c0_10] : memref<1x128xf32, #tpu.memory_space<vmem>>, vector<1x128xf32>
    %12 = vector.broadcast %11 : vector<1x128xf32> to vector<16x128xf32>
    %13 = arith.addf %10, %12 : vector<16x128xf32>
    %14 = arith.mulf %13, %13 : vector<16x128xf32>
    %cst_11 = arith.constant dense<0.000000e+00> : vector<16xf32>
    %15 = vector.multi_reduction <add>, %14, %cst_11 [1] : vector<16x128xf32> to vector<16xf32>
    %16 = vector.shape_cast %15 : vector<16xf32> to vector<16x1xf32>
    %cst_12 = arith.constant 1.000000e-24 : f32
    %17 = vector.broadcast %cst_12 : f32 to vector<16x1xf32>
    %18 = arith.maximumf %16, %17 : vector<16x1xf32>
    %19 = math.rsqrt %18 : vector<16x1xf32>
    %20 = vector.broadcast %19 : vector<16x1xf32> to vector<16x128xf32>
    %21 = arith.mulf %13, %20 : vector<16x128xf32>
    %c0_13 = arith.constant 0 : index
    %c0_14 = arith.constant 0 : index
    %22 = vector.load %arg6[%c0_13, %c0_14] : memref<16x128xf32, #tpu.memory_space<vmem>>, vector<16x128xf32>
    tpu.vector_store %arg6[%c0_13, %c0_14], %21 {strides = array<i32>} : memref<16x128xf32, #tpu.memory_space<vmem>>, vector<16x128xf32>,
    return
  }
  func.func @transform_0(%arg0: i32) -> (i32, i32) {
    %c0_i32 = arith.constant 0 : i32
    %c0_i32_0 = arith.constant 0 : i32
    return %arg0, %c0_i32 : i32, i32
  }
  func.func @transform_1(%arg0: i32) -> (i32, i32) {
    %c0_i32 = arith.constant 0 : i32
    %c0_i32_0 = arith.constant 0 : i32
    %c0_i32_1 = arith.constant 0 : i32
    return %c0_i32, %c0_i32_0 : i32, i32
  }
  func.func @transform_2(%arg0: i32) -> (i32, i32) {
    %c0_i32 = arith.constant 0 : i32
    %c0_i32_0 = arith.constant 0 : i32
    %c0_i32_1 = arith.constant 0 : i32
    return %c0_i32, %c0_i32_0 : i32, i32
  }
  func.func @transform_3(%arg0: i32) -> (i32, i32) {
    %c0_i32 = arith.constant 0 : i32
    %c0_i32_0 = arith.constant 0 : i32
    %c0_i32_1 = arith.constant 0 : i32
    return %c0_i32, %c0_i32_0 : i32, i32
  }
  func.func @transform_4(%arg0: i32) -> (i32, i32) {
    %c0_i32 = arith.constant 0 : i32
    %c0_i32_0 = arith.constant 0 : i32
    %c0_i32_1 = arith.constant 0 : i32
    return %c0_i32, %c0_i32_0 : i32, i32
  }
  func.func @transform_5(%arg0: i32) -> (i32, i32) {
    %c0_i32 = arith.constant 0 : i32
    %c0_i32_0 = arith.constant 0 : i32
    return %arg0, %c0_i32 : i32, i32
  }
}

</mosaic_0001>

<llo_original>
// kernel: tpu_custom_call.1
$region0: #{tpu_custom_call.1}
  #allocation0 [shape = 'u32[]', space=smem, size = 0x4, offset = 0x4, fixed_abs, tag = 'smem constant byte address 0x4 - core index']
  #allocation1 [shape = 'u32[72,128]{1,0:T(1,128)}', space=vmem, size = 0x9000, scoped, tag = 'internal scratch']
  %s0 = inlined_call_operand.hbm [shape: bf16[16,128], index: 0, kind: input, shape index: {}]
  %s1 = inlined_call_operand.hbm [shape: bf16[128,256], index: 1, kind: input, shape index: {}]
  %s2 = inlined_call_operand.hbm [shape: f32[1,256], index: 2, kind: input, shape index: {}]
  %s3 = inlined_call_operand.hbm [shape: bf16[256,128], index: 3, kind: input, shape index: {}]
  %s4 = inlined_call_operand.vmem [shape: f32[1,128], index: 4, kind: input, shape index: {}]
  %s5 = inlined_call_operand.hbm [shape: f32[16,128], index: 5, kind: output, shape index: {}]
  %s6 = sld [smem:[#allocation0]]
  $region46: #{tpu_custom_call.1} parent=0
    _
  %s8 = ssub.s32 1, %s6
  %s9 = scalar_select 0, %s8, %s6
  $region1: #{tpu_custom_call.1} parent=0
    #allocation2 [shape = 'u8[4096]{0}', space=vmem, size = 0x1000, scoped, tag = 'input window, operand 0, single buffered']
    #allocation3 [shape = 's32[1]{0}', space=sflag, size = 0x4, scoped, tag = 'scoped memory for tpu_custom_call.1']
    #allocation4 [shape = 's32[1]{0}', space=sflag, size = 0x4, scoped, tag = 'scoped memory for tpu_custom_call.1']
    #allocation5 [shape = 'u8[65536]{0}', space=vmem, size = 0x10000, scoped, tag = 'input window, operand 1, single buffered']
    #allocation6 [shape = 's32[1]{0}', space=sflag, size = 0x4, scoped, tag = 'scoped memory for tpu_custom_call.1']
    #allocation7 [shape = 'u8[1024]{0}', space=vmem, size = 0x400, scoped, tag = 'input window, operand 2, single buffered']
    #allocation8 [shape = 'u8[65536]{0}', space=vmem, size = 0x10000, scoped, tag = 'input window, operand 3, single buffered']
    #allocation9 [shape = 's32[1]{0}', space=sflag, size = 0x4, scoped, tag = 'scoped memory for tpu_custom_call.1']
    #allocation10 [shape = 'u8[8192]{0}', space=vmem, size = 0x2000, scoped, tag = 'output window, operand 0, single buffered']
    %10 = vsyncpa [#allocation3], 0
    %11 = vsyncpa [#allocation6], 0
    %12 = vsyncpa [#allocation9], 0
    %13 = vsyncpa [#allocation4], 0
    // Predicated region
    $region2: #{tpu_custom_call.1} parent=1 // pred_check
      _
    $region3: #{tpu_custom_call.1} parent=1 // pred_check_branch
      %15 = sbr.rel (0) target = $region5
    $region4: #{tpu_custom_call.1} parent=1 // pred_region
      %17 = vsyncadd [#allocation3], 0
      %s18 = sshll.u32 %s0, 4
      %s19 = int_to_ptr.hbm [resolvable:$true] %s18
      %s20 = sshll.u32 [#allocation2], 4
      %s21 = int_to_ptr.vmem [resolvable:$true] %s20
      %26 = dma.hbm_to_vmem [thread:$0]  %s19, 128, %s21, [#allocation3], 64, 64, 4
    $region5: #{tpu_custom_call.1} parent=1 // pred_fallthru
      _
    // Predicated region
    $region6: #{tpu_custom_call.1} parent=1 // pred_check
      _
    $region7: #{tpu_custom_call.1} parent=1 // pred_check_branch
      %28 = sbr.rel (0) target = $region9
    $region8: #{tpu_custom_call.1} parent=1 // pred_region
      %30 = vsyncadd [#allocation6], 0
      %s31 = sshll.u32 %s1, 4
      %s32 = int_to_ptr.hbm [resolvable:$true] %s31
      %s33 = sshll.u32 [#allocation5], 4
      %s34 = int_to_ptr.vmem [resolvable:$true] %s33
      %39 = dma.hbm_to_vmem [thread:$0]  %s32, 2048, %s34, [#allocation6], 128, 128, 8
    $region9: #{tpu_custom_call.1} parent=1 // pred_fallthru
      _
    // Predicated region
    $region10: #{tpu_custom_call.1} parent=1 // pred_check
      _
    $region11: #{tpu_custom_call.1} parent=1 // pred_check_branch
      %41 = sbr.rel (0) target = $region13
    $region12: #{tpu_custom_call.1} parent=1 // pred_region
      %43 = vsyncadd [#allocation6], 0
      %s45 = sshll.u32 %s2, 4
      %s46 = int_to_ptr.hbm [resolvable:$true] %s45
      %s47 = sshll.u32 [#allocation7], 4
      %s48 = int_to_ptr.vmem [resolvable:$true] %s47
      %50 = dma.hbm_to_vmem [thread:$0]  %s46, 32, %s48, [#allocation6]
    $region13: #{tpu_custom_call.1} parent=1 // pred_fallthru
      _
    // Predicated region
    $region14: #{tpu_custom_call.1} parent=1 // pred_check
      _
    $region15: #{tpu_custom_call.1} parent=1 // pred_check_branch
      %52 = sbr.rel (0) target = $region17
    $region16: #{tpu_custom_call.1} parent=1 // pred_region
      %54 = vsyncadd [#allocation9], 0
      %s55 = sshll.u32 %s3, 4
      %s56 = int_to_ptr.hbm [resolvable:$true] %s55
      %s57 = sshll.u32 [#allocation8], 4
      %s58 = int_to_ptr.vmem [resolvable:$true] %s57
      %63 = dma.hbm_to_vmem [thread:$0]  %s56, 2048, %s58, [#allocation9], 64, 64, 4
    $region17: #{tpu_custom_call.1} parent=1 // pred_fallthru
      _
    // Predicated region
    $region18: #{tpu_custom_call.1} parent=1 // pred_check
      _
    $region19: #{tpu_custom_call.1} parent=1 // pred_check_branch
      %65 = sbr.rel (0) target = $region21
    $region20: #{tpu_custom_call.1} parent=1 // pred_region
      _
    $region21: #{tpu_custom_call.1} parent=1 // pred_fallthru
      _
    // Predicated region
    $region22: #{tpu_custom_call.1} parent=1 // pred_check
      _
    $region23: #{tpu_custom_call.1} parent=1 // pred_check_branch
      %67 = sbr.rel (0) target = $region25
    $region24: #{tpu_custom_call.1} parent=1 // pred_region
      %69 = dma.done [#allocation3], 128
    $region25: #{tpu_custom_call.1} parent=1 // pred_fallthru
      _
    // Predicated region
    $region26: #{tpu_custom_call.1} parent=1 // pred_check
      _
    $region27: #{tpu_custom_call.1} parent=1 // pred_check_branch
      %71 = sbr.rel (0) target = $region29
    $region28: #{tpu_custom_call.1} parent=1 // pred_region
      %73 = dma.done [#allocation6], 2048
    $region29: #{tpu_custom_call.1} parent=1 // pred_fallthru
      _
    // Predicated region
    $region30: #{tpu_custom_call.1} parent=1 // pred_check
      _
    $region31: #{tpu_custom_call.1} parent=1 // pred_check_branch
      %75 = sbr.rel (0) target = $region33
    $region32: #{tpu_custom_call.1} parent=1 // pred_region
      %77 = dma.done [#allocation6], 32
    $region33: #{tpu_custom_call.1} parent=1 // pred_fallthru
      _
    // Predicated region
    $region34: #{tpu_custom_call.1} parent=1 // pred_check
      _
    $region35: #{tpu_custom_call.1} parent=1 // pred_check_branch
      %79 = sbr.rel (0) target = $region37
    $region36: #{tpu_custom_call.1} parent=1 // pred_region
      %81 = dma.done [#allocation9], 2048
    $region37: #{tpu_custom_call.1} parent=1 // pred_fallthru
      _
    %v82 = vld [vmem:[#allocation2] sm:$0xf]
    %v83 = vld [vmem:[#allocation2 + $0x4] sm:$0xf]
    %v84 = vld [vmem:[#allocation5] sm:$0xff]
    %v85 = vld [vmem:[#allocation5 + $0x8] sm:$0xff]
    %v86 = vld [vmem:[#allocation5 + $0x10] sm:$0xff]
    %v87 = vld [vmem:[#allocation5 + $0x18] sm:$0xff]
    %v88 = vld [vmem:[#allocation5 + $0x20] sm:$0xff]
    %v89 = vld [vmem:[#allocation5 + $0x28] sm:$0xff]
    %v90 = vld [vmem:[#allocation5 + $0x30] sm:$0xff]
    %v91 = vld [vmem:[#allocation5 + $0x38] sm:$0xff]
    %v92 = vld [vmem:[#allocation5 + $0x40] sm:$0xff]
    %v93 = vld [vmem:[#allocation5 + $0x48] sm:$0xff]
    %v94 = vld [vmem:[#allocation5 + $0x50] sm:$0xff]
    %v95 = vld [vmem:[#allocation5 + $0x58] sm:$0xff]
    %v96 = vld [vmem:[#allocation5 + $0x60] sm:$0xff]
    %v97 = vld [vmem:[#allocation5 + $0x68] sm:$0xff]
    %v98 = vld [vmem:[#allocation5 + $0x70] sm:$0xff]
    %v99 = vld [vmem:[#allocation5 + $0x78] sm:$0xff]
    %v100 = vld [vmem:[#allocation7] sm:$0x3]
    %v102 = vperm.slane %v100, 0
    %v103 = vperm.slane %v100, 1
    %v108 = vunpack.c.l.b16 %v82
    %v109 = vunpack.c.l.b16 %v83
    %v110 = vpack.c.b16 %v109, %v108
    %v128 = vunpack.c.l.b16 %v84
    %v129 = vunpack.c.h.b16 %v84
    %v130 = vunpack.c.l.b16 %v85
    %v131 = vunpack.c.h.b16 %v85
    %v132 = vunpack.c.l.b16 %v86
    %v133 = vunpack.c.h.b16 %v86
    %v134 = vunpack.c.l.b16 %v87
    %v135 = vunpack.c.h.b16 %v87
    %v136 = vunpack.c.l.b16 %v88
    %v137 = vunpack.c.h.b16 %v88
    %v138 = vunpack.c.l.b16 %v89
    %v139 = vunpack.c.h.b16 %v89
    %v140 = vunpack.c.l.b16 %v90
    %v141 = vunpack.c.h.b16 %v90
    %v142 = vunpack.c.l.b16 %v91
    %v143 = vunpack.c.h.b16 %v91
    %v144 = vunpack.c.l.b16 %v92
    %v145 = vunpack.c.h.b16 %v92
    %v146 = vunpack.c.l.b16 %v93
    %v147 = vunpack.c.h.b16 %v93
    %v148 = vunpack.c.l.b16 %v94
    %v149 = vunpack.c.h.b16 %v94
    %v150 = vunpack.c.l.b16 %v95
    %v151 = vunpack.c.h.b16 %v95
    %v152 = vunpack.c.l.b16 %v96
    %v153 = vunpack.c.h.b16 %v96
    %v154 = vunpack.c.l.b16 %v97
    %v155 = vunpack.c.h.b16 %v97
    %v156 = vunpack.c.l.b16 %v98
    %v157 = vunpack.c.h.b16 %v98
    %v158 = vunpack.c.l.b16 %v99
    %v159 = vunpack.c.h.b16 %v99
    %v160 = vpack.c.b16 %v130, %v128
    %v161 = vpack.c.b16 %v131, %v129
    %v162 = vpack.c.b16 %v134, %v132
    %v163 = vpack.c.b16 %v135, %v133
    %v164 = vpack.c.b16 %v138, %v136
    %v165 = vpack.c.b16 %v139, %v137
    %v166 = vpack.c.b16 %v142, %v140
    %v167 = vpack.c.b16 %v143, %v141
    %v168 = vpack.c.b16 %v146, %v144
    %v169 = vpack.c.b16 %v147, %v145
    %v170 = vpack.c.b16 %v150, %v148
    %v171 = vpack.c.b16 %v151, %v149
    %v172 = vpack.c.b16 %v154, %v152
    %v173 = vpack.c.b16 %v155, %v153
    %v174 = vpack.c.b16 %v158, %v156
    %v175 = vpack.c.b16 %v159, %v157
    %192 = vmatpush.bf16.msra.mxu0 %v174
    %193 = vmatpush.bf16.msra.mxu0 %v172
    %194 = vmatpush.bf16.msra.mxu0 %v170
    %195 = vmatpush.bf16.msra.mxu0 %v168
    %196 = vmatpush.bf16.msra.mxu0 %v166
    %197 = vmatpush.bf16.msra.mxu0 %v164
    %198 = vmatpush.bf16.msra.mxu0 %v162
    %199 = vmatpush.bf16.msra.mxu0 %v160
    %200 = vmatmul.bf16.gmra.mxu0 %v110
    %v201 = vpop.f32.mrf.mxu0
    %v202 = vadd.f32 %v102, %v201
    %v203 = vpop.f32.mrf.mxu0
    %v204 = vadd.f32 %v102, %v203
    %205 = vdwg.mxu0
    %206 = vmatpush.bf16.msra.mxu0 %v175
    %207 = vmatpush.bf16.msra.mxu0 %v173
    %208 = vmatpush.bf16.msra.mxu0 %v171
    %209 = vmatpush.bf16.msra.mxu0 %v169
    %210 = vmatpush.bf16.msra.mxu0 %v167
    %211 = vmatpush.bf16.msra.mxu0 %v165
    %212 = vmatpush.bf16.msra.mxu0 %v163
    %213 = vmatpush.bf16.msra.mxu0 %v161
    %214 = vmatmul.bf16.gmra.mxu0 %v110
    %v215 = vpop.f32.mrf.mxu0
    %v216 = vadd.f32 %v103, %v215
    %v217 = vpop.f32.mrf.mxu0
    %v218 = vadd.f32 %v103, %v217
    %219 = vdwg.mxu0
    %v220 = vmax.f32 %v202, 0.0
    %v221 = vmax.f32 %v216, 0.0
    %v222 = vmax.f32 %v204, 0.0
    %v223 = vmax.f32 %v218, 0.0
    %v224 = vpack.c.bf16 %v222, %v220
    %v225 = vpack.c.bf16 %v223, %v221
    %v226 = vld [vmem:[#allocation8] sm:$0xf]
    %v227 = vld [vmem:[#allocation8 + $0x4] sm:$0xf]
    %v228 = vld [vmem:[#allocation8 + $0x8] sm:$0xf]
    %v229 = vld [vmem:[#allocation8 + $0xc] sm:$0xf]
    %v230 = vld [vmem:[#allocation8 + $0x10] sm:$0xf]
    %v231 = vld [vmem:[#allocation8 + $0x14] sm:$0xf]
    %v232 = vld [vmem:[#allocation8 + $0x18] sm:$0xf]
    %v233 = vld [vmem:[#allocation8 + $0x1c] sm:$0xf]
    %v234 = vld [vmem:[#allocation8 + $0x20] sm:$0xf]
    %v235 = vld [vmem:[#allocation8 + $0x24] sm:$0xf]
    %v236 = vld [vmem:[#allocation8 + $0x28] sm:$0xf]
    %v237 = vld [vmem:[#allocation8 + $0x2c] sm:$0xf]
    %v238 = vld [vmem:[#allocation8 + $0x30] sm:$0xf]
    %v239 = vld [vmem:[#allocation8 + $0x34] sm:$0xf]
    %v240 = vld [vmem:[#allocation8 + $0x38] sm:$0xf]
    %v241 = vld [vmem:[#allocation8 + $0x3c] sm:$0xf]
    %v242 = vld [vmem:[#allocation8 + $0x40] sm:$0xf]
    %v243 = vld [vmem:[#allocation8 + $0x44] sm:$0xf]
    %v244 = vld [vmem:[#allocation8 + $0x48] sm:$0xf]
    %v245 = vld [vmem:[#allocation8 + $0x4c] sm:$0xf]
    %v246 = vld [vmem:[#allocation8 + $0x50] sm:$0xf]
    %v247 = vld [vmem:[#allocation8 + $0x54] sm:$0xf]
    %v248 = vld [vmem:[#allocation8 + $0x58] sm:$0xf]
    %v249 = vld [vmem:[#allocation8 + $0x5c] sm:$0xf]
    %v250 = vld [vmem:[#allocation8 + $0x60] sm:$0xf]
    %v251 = vld [vmem:[#allocation8 + $0x64] sm:$0xf]
    %v252 = vld [vmem:[#allocation8 + $0x68] sm:$0xf]
    %v253 = vld [vmem:[#allocation8 + $0x6c] sm:$0xf]
    %v254 = vld [vmem:[#allocation8 + $0x70] sm:$0xf]
    %v255 = vld [vmem:[#allocation8 + $0x74] sm:$0xf]
    %v256 = vld [vmem:[#allocation8 + $0x78] sm:$0xf]
    %v257 = vld [vmem:[#allocation8 + $0x7c] sm:$0xf]
    %v258 = vld [vmem:[%s4] sm:$0x1]
    %v260 = vperm.slane %v258, 0
    %v294 = vunpack.c.l.b16 %v226
    %v295 = vunpack.c.l.b16 %v227
    %v296 = vunpack.c.l.b16 %v228
    %v297 = vunpack.c.l.b16 %v229
    %v298 = vunpack.c.l.b16 %v230
    %v299 = vunpack.c.l.b16 %v231
    %v300 = vunpack.c.l.b16 %v232
    %v301 = vunpack.c.l.b16 %v233
    %v302 = vunpack.c.l.b16 %v234
    %v303 = vunpack.c.l.b16 %v235
    %v304 = vunpack.c.l.b16 %v236
    %v305 = vunpack.c.l.b16 %v237
    %v306 = vunpack.c.l.b16 %v238
    %v307 = vunpack.c.l.b16 %v239
    %v308 = vunpack.c.l.b16 %v240
    %v309 = vunpack.c.l.b16 %v241
    %v310 = vunpack.c.l.b16 %v242
    %v311 = vunpack.c.l.b16 %v243
    %v312 = vunpack.c.l.b16 %v244
    %v313 = vunpack.c.l.b16 %v245
    %v314 = vunpack.c.l.b16 %v246
    %v315 = vunpack.c.l.b16 %v247
    %v316 = vunpack.c.l.b16 %v248
    %v317 = vunpack.c.l.b16 %v249
    %v318 = vunpack.c.l.b16 %v250
    %v319 = vunpack.c.l.b16 %v251
    %v320 = vunpack.c.l.b16 %v252
    %v321 = vunpack.c.l.b16 %v253
    %v322 = vunpack.c.l.b16 %v254
    %v323 = vunpack.c.l.b16 %v255
    %v324 = vunpack.c.l.b16 %v256
    %v325 = vunpack.c.l.b16 %v257
    %v326 = vpack.c.b16 %v295, %v294
    %v327 = vpack.c.b16 %v297, %v296
    %v328 = vpack.c.b16 %v299, %v298
    %v329 = vpack.c.b16 %v301, %v300
    %v330 = vpack.c.b16 %v303, %v302
    %v331 = vpack.c.b16 %v305, %v304
    %v332 = vpack.c.b16 %v307, %v306
    %v333 = vpack.c.b16 %v309, %v308
    %v334 = vpack.c.b16 %v311, %v310
    %v335 = vpack.c.b16 %v313, %v312
    %v336 = vpack.c.b16 %v315, %v314
    %v337 = vpack.c.b16 %v317, %v316
    %v338 = vpack.c.b16 %v319, %v318
    %v339 = vpack.c.b16 %v321, %v320
    %v340 = vpack.c.b16 %v323, %v322
    %v341 = vpack.c.b16 %v325, %v324
    %358 = vmatpush.bf16.msra.mxu0 %v333
    %359 = vmatpush.bf16.msra.mxu0 %v332
    %360 = vmatpush.bf16.msra.mxu0 %v331
    %361 = vmatpush.bf16.msra.mxu0 %v330
    %362 = vmatpush.bf16.msra.mxu0 %v329
    %363 = vmatpush.bf16.msra.mxu0 %v328
    %364 = vmatpush.bf16.msra.mxu0 %v327
    %365 = vmatpush.bf16.msra.mxu0 %v326
    %366 = vmatmul.bf16.gmra.mxu0 %v224
    %v367 = vpop.f32.mrf.mxu0
    %v368 = vadd.f32 %v260, %v367
    %v369 = vpop.f32.mrf.mxu0
    %v370 = vadd.f32 %v260, %v369
    %371 = vdwg.mxu0
    %372 = vmatpush.bf16.msra.mxu0 %v341
    %373 = vmatpush.bf16.msra.mxu0 %v340
    %374 = vmatpush.bf16.msra.mxu0 %v339
    %375 = vmatpush.bf16.msra.mxu0 %v338
    %376 = vmatpush.bf16.msra.mxu0 %v337
    %377 = vmatpush.bf16.msra.mxu0 %v336
    %378 = vmatpush.bf16.msra.mxu0 %v335
    %379 = vmatpush.bf16.msra.mxu0 %v334
    %380 = vmatmul.bf16.gmra.mxu0 %v225
    %v381 = vpop.f32.mrf.mxu0
    %v382 = vadd.f32 %v368, %v381
    %v383 = vpop.f32.mrf.mxu0
    %v384 = vadd.f32 %v370, %v383
    %385 = vdwg.mxu0
    %v386 = vmul.f32 %v382, %v382
    %v387 = vmul.f32 %v384, %v384
    %388 = vadd.xlane.f32.xlu0 %v386
    %v389 = vpop.xlane.xlu0 %388
    %390 = vadd.xlane.f32.xlu0 %v387
    %v391 = vpop.xlane.xlu0 %390
    %v392 = vmax.f32 %v389, 1e-24
    %v393 = vmax.f32 %v391, 1e-24
    %v394 = vrsqrt.pop %v392
    %v395 = vmul.f32 %v394, %v392
    %v396 = vmul.f32 %v395, %v394
    %v397 = vmul.f32 0.5, %v396
    %v398 = vsub.f32 1.5, %v397
    %v399 = vmul.f32 %v394, %v398
    %vm400 = vweird.f32 %v392
    %vm401 = vweird.f32 %v394
    %vm402 = vmor %vm400, %vm401
    %v403 = vsel %vm402, %v394, %v399
    %v404 = vrsqrt.pop %v393
    %v405 = vmul.f32 %v404, %v393
    %v406 = vmul.f32 %v405, %v404
    %v407 = vmul.f32 0.5, %v406
    %v408 = vsub.f32 1.5, %v407
    %v409 = vmul.f32 %v404, %v408
    %vm410 = vweird.f32 %v393
    %vm411 = vweird.f32 %v404
    %vm412 = vmor %vm410, %vm411
    %v413 = vsel %vm412, %v404, %v409
    %v414 = vmul.f32 %v382, %v403
    %v415 = vmul.f32 %v384, %v413
    %416 = vst [vmem:[#allocation10] sm:$0xff] %v414
    %417 = vst [vmem:[#allocation10 + $0x8] sm:$0xff] %v415
    // Predicated region
    $region38: #{tpu_custom_call.1} parent=1 // pred_check
      _
    $region39: #{tpu_custom_call.1} parent=1 // pred_check_branch
      %419 = sbr.rel (0) target = $region41
    $region40: #{tpu_custom_call.1} parent=1 // pred_region
      %421 = vsyncadd [#allocation4], 0
      %s422 = sshll.u32 [#allocation10], 4
      %s423 = int_to_ptr.vmem [resolvable:$true] %s422
      %s424 = sshll.u32 %s5, 4
      %s425 = int_to_ptr.hbm [resolvable:$true] %s424
      %430 = dma.vmem_to_hbm [thread:$0]  %s423, 256, %s425, [#allocation4], 128, 128, 8
    $region41: #{tpu_custom_call.1} parent=1 // pred_fallthru
      _
    // Predicated region
    $region42: #{tpu_custom_call.1} parent=1 // pred_check
      _
    $region43: #{tpu_custom_call.1} parent=1 // pred_check_branch
      %432 = sbr.rel (0) target = $region45
    $region44: #{tpu_custom_call.1} parent=1 // pred_region
      %434 = dma.done [#allocation4], 256
    $region45: #{tpu_custom_call.1} parent=1 // pred_fallthru
      _
    %435 = vsyncpa [#allocation3], 1
    %436 = vsyncpa [#allocation6], 1
    %437 = vsyncpa [#allocation9], 1
    %438 = vsyncpa [#allocation4], 1

// kernel: tpu_custom_call.1
$region0: #{tpu_custom_call.1}
  #allocation0 [shape = 'u32[]', space=smem, size = 0x4, offset = 0x4, fixed_abs, tag = 'smem constant byte address 0x4 - core index']
  #allocation1 [shape = 'u32[72,128]{1,0:T(1,128)}', space=vmem, size = 0x9000, scoped, tag = 'internal scratch']
  %s0 = inlined_call_operand.hbm [shape: bf16[16,128], index: 0, kind: input, shape index: {}]
  %s1 = inlined_call_operand.hbm [shape: bf16[128,256], index: 1, kind: input, shape index: {}]
  %s2 = inlined_call_operand.hbm [shape: f32[1,256], index: 2, kind: input, shape index: {}]
  %s3 = inlined_call_operand.hbm [shape: bf16[256,128], index: 3, kind: input, shape index: {}]
  %s4 = inlined_call_operand.vmem [shape: f32[1,128], index: 4, kind: input, shape index: {}]
  %s5 = inlined_call_operand.hbm [shape: f32[16,128], index: 5, kind: output, shape index: {}]
  %s6 = sld [smem:[#allocation0]]
  $region46: #{tpu_custom_call.1} parent=0
    _
  %s8 = ssub.s32 1, %s6
  %s9 = scalar_select 0, %s8, %s6
  $region1: #{tpu_custom_call.1} parent=0
    #allocation2 [shape = 'u8[4096]{0}', space=vmem, size = 0x1000, scoped, tag = 'input window, operand 0, single buffered']
    #allocation3 [shape = 's32[1]{0}', space=sflag, size = 0x4, scoped, tag = 'scoped memory for tpu_custom_call.1']
    #allocation4 [shape = 's32[1]{0}', space=sflag, size = 0x4, scoped, tag = 'scoped memory for tpu_custom_call.1']
    #allocation5 [shape = 'u8[65536]{0}', space=vmem, size = 0x10000, scoped, tag = 'input window, operand 1, single buffered']
    #allocation6 [shape = 's32[1]{0}', space=sflag, size = 0x4, scoped, tag = 'scoped memory for tpu_custom_call.1']
    #allocation7 [shape = 'u8[1024]{0}', space=vmem, size = 0x400, scoped, tag = 'input window, operand 2, single buffered']
    #allocation8 [shape = 'u8[65536]{0}', space=vmem, size = 0x10000, scoped, tag = 'input window, operand 3, single buffered']
    #allocation9 [shape = 's32[1]{0}', space=sflag, size = 0x4, scoped, tag = 'scoped memory for tpu_custom_call.1']
    #allocation10 [shape = 'u8[8192]{0}', space=vmem, size = 0x2000, scoped, tag = 'output window, operand 0, single buffered']
    %10 = vsyncpa [#allocation3], 0
    %11 = vsyncpa [#allocation6], 0
    %12 = vsyncpa [#allocation9], 0
    %13 = vsyncpa [#allocation4], 0
    // Predicated region
    $region2: #{tpu_custom_call.1} parent=1 // pred_check
      _
    $region3: #{tpu_custom_call.1} parent=1 // pred_check_branch
      %15 = sbr.rel (0) target = $region5
    $region4: #{tpu_custom_call.1} parent=1 // pred_region
      %17 = vsyncadd [#allocation3], 0
      %s18 = sshll.u32 %s0, 4
      %s19 = int_to_ptr.hbm [resolvable:$true] %s18
      %s20 = sshll.u32 [#allocation2], 4
      %s21 = int_to_ptr.vmem [resolvable:$true] %s20
      %26 = dma.hbm_to_vmem [thread:$0]  %s19, 128, %s21, [#allocation3], 64, 64, 4
    $region5: #{tpu_custom_call.1} parent=1 // pred_fallthru
      _
    // Predicated region
    $region6: #{tpu_custom_call.1} parent=1 // pred_check
      _
    $region7: #{tpu_custom_call.1} parent=1 // pred_check_branch
      %28 = sbr.rel (0) target = $region9
    $region8: #{tpu_custom_call.1} parent=1 // pred_region
      %30 = vsyncadd [#allocation6], 0
      %s31 = sshll.u32 %s1, 4
      %s32 = int_to_ptr.hbm [resolvable:$true] %s31
      %s33 = sshll.u32 [#allocation5], 4
      %s34 = int_to_ptr.vmem [resolvable:$true] %s33
      %39 = dma.hbm_to_vmem [thread:$0]  %s32, 2048, %s34, [#allocation6], 128, 128, 8
    $region9: #{tpu_custom_call.1} parent=1 // pred_fallthru
      _
    // Predicated region
    $region10: #{tpu_custom_call.1} parent=1 // pred_check
      _
    $region11: #{tpu_custom_call.1} parent=1 // pred_check_branch
      %41 = sbr.rel (0) target = $region13
    $region12: #{tpu_custom_call.1} parent=1 // pred_region
      %43 = vsyncadd [#allocation6], 0
      %s45 = sshll.u32 %s2, 4
      %s46 = int_to_ptr.hbm [resolvable:$true] %s45
      %s47 = sshll.u32 [#allocation7], 4
      %s48 = int_to_ptr.vmem [resolvable:$true] %s47
      %50 = dma.hbm_to_vmem [thread:$0]  %s46, 32, %s48, [#allocation6]
    $region13: #{tpu_custom_call.1} parent=1 // pred_fallthru
      _
    // Predicated region
    $region14: #{tpu_custom_call.1} parent=1 // pred_check
      _
    $region15: #{tpu_custom_call.1} parent=1 // pred_check_branch
      %52 = sbr.rel (0) target = $region17
    $region16: #{tpu_custom_call.1} parent=1 // pred_region
      %54 = vsyncadd [#allocation9], 0
      %s55 = sshll.u32 %s3, 4
      %s56 = int_to_ptr.hbm [resolvable:$true] %s55
      %s57 = sshll.u32 [#allocation8], 4
      %s58 = int_to_ptr.vmem [resolvable:$true] %s57
      %63 = dma.hbm_to_vmem [thread:$0]  %s56, 2048, %s58, [#allocation9], 64, 64, 4
    $region17: #{tpu_custom_call.1} parent=1 // pred_fallthru
      _
    // Predicated region
    $region18: #{tpu_custom_call.1} parent=1 // pred_check
      _
    $region19: #{tpu_custom_call.1} parent=1 // pred_check_branch
      %65 = sbr.rel (0) target = $region21
    $region20: #{tpu_custom_call.1} parent=1 // pred_region
      _
    $region21: #{tpu_custom_call.1} parent=1 // pred_fallthru
      _
    // Predicated region
    $region22: #{tpu_custom_call.1} parent=1 // pred_check
      _
    $region23: #{tpu_custom_call.1} parent=1 // pred_check_branch
      %67 = sbr.rel (0) target = $region25
    $region24: #{tpu_custom_call.1} parent=1 // pred_region
      %69 = dma.done [#allocation3], 128
    $region25: #{tpu_custom_call.1} parent=1 // pred_fallthru
      _
    // Predicated region
    $region26: #{tpu_custom_call.1} parent=1 // pred_check
      _
    $region27: #{tpu_custom_call.1} parent=1 // pred_check_branch
      %71 = sbr.rel (0) target = $region29
    $region28: #{tpu_custom_call.1} parent=1 // pred_region
      %73 = dma.done [#allocation6], 2048
    $region29: #{tpu_custom_call.1} parent=1 // pred_fallthru
      _
    // Predicated region
    $region30: #{tpu_custom_call.1} parent=1 // pred_check
      _
    $region31: #{tpu_custom_call.1} parent=1 // pred_check_branch
      %75 = sbr.rel (0) target = $region33
    $region32: #{tpu_custom_call.1} parent=1 // pred_region
      %77 = dma.done [#allocation6], 32
    $region33: #{tpu_custom_call.1} parent=1 // pred_fallthru
      _
    // Predicated region
    $region34: #{tpu_custom_call.1} parent=1 // pred_check
      _
    $region35: #{tpu_custom_call.1} parent=1 // pred_check_branch
      %79 = sbr.rel (0) target = $region37
    $region36: #{tpu_custom_call.1} parent=1 // pred_region
      %81 = dma.done [#allocation9], 2048
    $region37: #{tpu_custom_call.1} parent=1 // pred_fallthru
      _
    %v82 = vld [vmem:[#allocation2] sm:$0xf]
    %v83 = vld [vmem:[#allocation2 + $0x4] sm:$0xf]
    %v84 = vld [vmem:[#allocation5] sm:$0xff]
    %v85 = vld [vmem:[#allocation5 + $0x8] sm:$0xff]
    %v86 = vld [vmem:[#allocation5 + $0x10] sm:$0xff]
    %v87 = vld [vmem:[#allocation5 + $0x18] sm:$0xff]
    %v88 = vld [vmem:[#allocation5 + $0x20] sm:$0xff]
    %v89 = vld [vmem:[#allocation5 + $0x28] sm:$0xff]
    %v90 = vld [vmem:[#allocation5 + $0x30] sm:$0xff]
    %v91 = vld [vmem:[#allocation5 + $0x38] sm:$0xff]
    %v92 = vld [vmem:[#allocation5 + $0x40] sm:$0xff]
    %v93 = vld [vmem:[#allocation5 + $0x48] sm:$0xff]
    %v94 = vld [vmem:[#allocation5 + $0x50] sm:$0xff]
    %v95 = vld [vmem:[#allocation5 + $0x58] sm:$0xff]
    %v96 = vld [vmem:[#allocation5 + $0x60] sm:$0xff]
    %v97 = vld [vmem:[#allocation5 + $0x68] sm:$0xff]
    %v98 = vld [vmem:[#allocation5 + $0x70] sm:$0xff]
    %v99 = vld [vmem:[#allocation5 + $0x78] sm:$0xff]
    %v100 = vld [vmem:[#allocation7] sm:$0x3]
    %v102 = vperm.slane %v100, 0
    %v103 = vperm.slane %v100, 1
    %v108 = vunpack.c.l.b16 %v82
    %v109 = vunpack.c.l.b16 %v83
    %v110 = vpack.c.b16 %v109, %v108
    %v128 = vunpack.c.l.b16 %v84
    %v129 = vunpack.c.h.b16 %v84
    %v130 = vunpack.c.l.b16 %v85
    %v131 = vunpack.c.h.b16 %v85
    %v132 = vunpack.c.l.b16 %v86
    %v133 = vunpack.c.h.b16 %v86
    %v134 = vunpack.c.l.b16 %v87
    %v135 = vunpack.c.h.b16 %v87
    %v136 = vunpack.c.l.b16 %v88
    %v137 = vunpack.c.h.b16 %v88
    %v138 = vunpack.c.l.b16 %v89
    %v139 = vunpack.c.h.b16 %v89
    %v140 = vunpack.c.l.b16 %v90
    %v141 = vunpack.c.h.b16 %v90
    %v142 = vunpack.c.l.b16 %v91
    %v143 = vunpack.c.h.b16 %v91
    %v144 = vunpack.c.l.b16 %v92
    %v145 = vunpack.c.h.b16 %v92
    %v146 = vunpack.c.l.b16 %v93
    %v147 = vunpack.c.h.b16 %v93
    %v148 = vunpack.c.l.b16 %v94
    %v149 = vunpack.c.h.b16 %v94
    %v150 = vunpack.c.l.b16 %v95
    %v151 = vunpack.c.h.b16 %v95
    %v152 = vunpack.c.l.b16 %v96
    %v153 = vunpack.c.h.b16 %v96
    %v154 = vunpack.c.l.b16 %v97
    %v155 = vunpack.c.h.b16 %v97
    %v156 = vunpack.c.l.b16 %v98
    %v157 = vunpack.c.h.b16 %v98
    %v158 = vunpack.c.l.b16 %v99
    %v159 = vunpack.c.h.b16 %v99
    %v160 = vpack.c.b16 %v130, %v128
    %v161 = vpack.c.b16 %v131, %v129
    %v162 = vpack.c.b16 %v134, %v132
    %v163 = vpack.c.b16 %v135, %v133
    %v164 = vpack.c.b16 %v138, %v136
    %v165 = vpack.c.b16 %v139, %v137
    %v166 = vpack.c.b16 %v142, %v140
    %v167 = vpack.c.b16 %v143, %v141
    %v168 = vpack.c.b16 %v146, %v144
    %v169 = vpack.c.b16 %v147, %v145
    %v170 = vpack.c.b16 %v150, %v148
    %v171 = vpack.c.b16 %v151, %v149
    %v172 = vpack.c.b16 %v154, %v152
    %v173 = vpack.c.b16 %v155, %v153
    %v174 = vpack.c.b16 %v158, %v156
    %v175 = vpack.c.b16 %v159, %v157
    %192 = vmatpush.bf16.msra.mxu0 %v174
    %193 = vmatpush.bf16.msra.mxu0 %v172
    %194 = vmatpush.bf16.msra.mxu0 %v170
    %195 = vmatpush.bf16.msra.mxu0 %v168
    %196 = vmatpush.bf16.msra.mxu0 %v166
    %197 = vmatpush.bf16.msra.mxu0 %v164
    %198 = vmatpush.bf16.msra.mxu0 %v162
    %199 = vmatpush.bf16.msra.mxu0 %v160
    %200 = vmatmul.bf16.gmra.mxu0 %v110
    %v201 = vpop.f32.mrf.mxu0
    %v202 = vadd.f32 %v102, %v201
    %v203 = vpop.f32.mrf.mxu0
    %v204 = vadd.f32 %v102, %v203
    %205 = vdwg.mxu0
    %206 = vmatpush.bf16.msra.mxu0 %v175
    %207 = vmatpush.bf16.msra.mxu0 %v173
    %208 = vmatpush.bf16.msra.mxu0 %v171
    %209 = vmatpush.bf16.msra.mxu0 %v169
    %210 = vmatpush.bf16.msra.mxu0 %v167
    %211 = vmatpush.bf16.msra.mxu0 %v165
    %212 = vmatpush.bf16.msra.mxu0 %v163
    %213 = vmatpush.bf16.msra.mxu0 %v161
    %214 = vmatmul.bf16.gmra.mxu0 %v110
    %v215 = vpop.f32.mrf.mxu0
    %v216 = vadd.f32 %v103, %v215
    %v217 = vpop.f32.mrf.mxu0
    %v218 = vadd.f32 %v103, %v217
    %219 = vdwg.mxu0
    %v220 = vmax.f32 %v202, 0.0
    %v221 = vmax.f32 %v216, 0.0
    %v222 = vmax.f32 %v204, 0.0
    %v223 = vmax.f32 %v218, 0.0
    %v224 = vpack.c.bf16 %v222, %v220
    %v225 = vpack.c.bf16 %v223, %v221
    %v226 = vld [vmem:[#allocation8] sm:$0xf]
    %v227 = vld [vmem:[#allocation8 + $0x4] sm:$0xf]
    %v228 = vld [vmem:[#allocation8 + $0x8] sm:$0xf]
    %v229 = vld [vmem:[#allocation8 + $0xc] sm:$0xf]
    %v230 = vld [vmem:[#allocation8 + $0x10] sm:$0xf]
    %v231 = vld [vmem:[#allocation8 + $0x14] sm:$0xf]
    %v232 = vld [vmem:[#allocation8 + $0x18] sm:$0xf]
    %v233 = vld [vmem:[#allocation8 + $0x1c] sm:$0xf]
    %v234 = vld [vmem:[#allocation8 + $0x20] sm:$0xf]
    %v235 = vld [vmem:[#allocation8 + $0x24] sm:$0xf]
    %v236 = vld [vmem:[#allocation8 + $0x28] sm:$0xf]
    %v237 = vld [vmem:[#allocation8 + $0x2c] sm:$0xf]
    %v238 = vld [vmem:[#allocation8 + $0x30] sm:$0xf]
    %v239 = vld [vmem:[#allocation8 + $0x34] sm:$0xf]
    %v240 = vld [vmem:[#allocation8 + $0x38] sm:$0xf]
    %v241 = vld [vmem:[#allocation8 + $0x3c] sm:$0xf]
    %v242 = vld [vmem:[#allocation8 + $0x40] sm:$0xf]
    %v243 = vld [vmem:[#allocation8 + $0x44] sm:$0xf]
    %v244 = vld [vmem:[#allocation8 + $0x48] sm:$0xf]
    %v245 = vld [vmem:[#allocation8 + $0x4c] sm:$0xf]
    %v246 = vld [vmem:[#allocation8 + $0x50] sm:$0xf]
    %v247 = vld [vmem:[#allocation8 + $0x54] sm:$0xf]
    %v248 = vld [vmem:[#allocation8 + $0x58] sm:$0xf]
    %v249 = vld [vmem:[#allocation8 + $0x5c] sm:$0xf]
    %v250 = vld [vmem:[#allocation8 + $0x60] sm:$0xf]
    %v251 = vld [vmem:[#allocation8 + $0x64] sm:$0xf]
    %v252 = vld [vmem:[#allocation8 + $0x68] sm:$0xf]
    %v253 = vld [vmem:[#allocation8 + $0x6c] sm:$0xf]
    %v254 = vld [vmem:[#allocation8 + $0x70] sm:$0xf]
    %v255 = vld [vmem:[#allocation8 + $0x74] sm:$0xf]
    %v256 = vld [vmem:[#allocation8 + $0x78] sm:$0xf]
    %v257 = vld [vmem:[#allocation8 + $0x7c] sm:$0xf]
    %v258 = vld [vmem:[%s4] sm:$0x1]
    %v260 = vperm.slane %v258, 0
    %v294 = vunpack.c.l.b16 %v226
    %v295 = vunpack.c.l.b16 %v227
    %v296 = vunpack.c.l.b16 %v228
    %v297 = vunpack.c.l.b16 %v229
    %v298 = vunpack.c.l.b16 %v230
    %v299 = vunpack.c.l.b16 %v231
    %v300 = vunpack.c.l.b16 %v232
    %v301 = vunpack.c.l.b16 %v233
    %v302 = vunpack.c.l.b16 %v234
    %v303 = vunpack.c.l.b16 %v235
    %v304 = vunpack.c.l.b16 %v236
    %v305 = vunpack.c.l.b16 %v237
    %v306 = vunpack.c.l.b16 %v238
    %v307 = vunpack.c.l.b16 %v239
    %v308 = vunpack.c.l.b16 %v240
    %v309 = vunpack.c.l.b16 %v241
    %v310 = vunpack.c.l.b16 %v242
    %v311 = vunpack.c.l.b16 %v243
    %v312 = vunpack.c.l.b16 %v244
    %v313 = vunpack.c.l.b16 %v245
    %v314 = vunpack.c.l.b16 %v246
    %v315 = vunpack.c.l.b16 %v247
    %v316 = vunpack.c.l.b16 %v248
    %v317 = vunpack.c.l.b16 %v249
    %v318 = vunpack.c.l.b16 %v250
    %v319 = vunpack.c.l.b16 %v251
    %v320 = vunpack.c.l.b16 %v252
    %v321 = vunpack.c.l.b16 %v253
    %v322 = vunpack.c.l.b16 %v254
    %v323 = vunpack.c.l.b16 %v255
    %v324 = vunpack.c.l.b16 %v256
    %v325 = vunpack.c.l.b16 %v257
    %v326 = vpack.c.b16 %v295, %v294
    %v327 = vpack.c.b16 %v297, %v296
    %v328 = vpack.c.b16 %v299, %v298
    %v329 = vpack.c.b16 %v301, %v300
    %v330 = vpack.c.b16 %v303, %v302
    %v331 = vpack.c.b16 %v305, %v304
    %v332 = vpack.c.b16 %v307, %v306
    %v333 = vpack.c.b16 %v309, %v308
    %v334 = vpack.c.b16 %v311, %v310
    %v335 = vpack.c.b16 %v313, %v312
    %v336 = vpack.c.b16 %v315, %v314
    %v337 = vpack.c.b16 %v317, %v316
    %v338 = vpack.c.b16 %v319, %v318
    %v339 = vpack.c.b16 %v321, %v320
    %v340 = vpack.c.b16 %v323, %v322
    %v341 = vpack.c.b16 %v325, %v324
    %358 = vmatpush.bf16.msra.mxu0 %v333
    %359 = vmatpush.bf16.msra.mxu0 %v332
    %360 = vmatpush.bf16.msra.mxu0 %v331
    %361 = vmatpush.bf16.msra.mxu0 %v330
    %362 = vmatpush.bf16.msra.mxu0 %v329
    %363 = vmatpush.bf16.msra.mxu0 %v328
    %364 = vmatpush.bf16.msra.mxu0 %v327
    %365 = vmatpush.bf16.msra.mxu0 %v326
    %366 = vmatmul.bf16.gmra.mxu0 %v224
    %v367 = vpop.f32.mrf.mxu0
    %v368 = vadd.f32 %v260, %v367
    %v369 = vpop.f32.mrf.mxu0
    %v370 = vadd.f32 %v260, %v369
    %371 = vdwg.mxu0
    %372 = vmatpush.bf16.msra.mxu0 %v341
    %373 = vmatpush.bf16.msra.mxu0 %v340
    %374 = vmatpush.bf16.msra.mxu0 %v339
    %375 = vmatpush.bf16.msra.mxu0 %v338
    %376 = vmatpush.bf16.msra.mxu0 %v337
    %377 = vmatpush.bf16.msra.mxu0 %v336
    %378 = vmatpush.bf16.msra.mxu0 %v335
    %379 = vmatpush.bf16.msra.mxu0 %v334
    %380 = vmatmul.bf16.gmra.mxu0 %v225
    %v381 = vpop.f32.mrf.mxu0
    %v382 = vadd.f32 %v368, %v381
    %v383 = vpop.f32.mrf.mxu0
    %v384 = vadd.f32 %v370, %v383
    %385 = vdwg.mxu0
    %v386 = vmul.f32 %v382, %v382
    %v387 = vmul.f32 %v384, %v384
    %388 = vadd.xlane.f32.xlu0 %v386
    %v389 = vpop.xlane.xlu0 %388
    %390 = vadd.xlane.f32.xlu0 %v387
    %v391 = vpop.xlane.xlu0 %390
    %v392 = vmax.f32 %v389, 1e-24
    %v393 = vmax.f32 %v391, 1e-24
    %v394 = vrsqrt.pop %v392
    %v395 = vmul.f32 %v394, %v392
    %v396 = vmul.f32 %v395, %v394
    %v397 = vmul.f32 0.5, %v396
    %v398 = vsub.f32 1.5, %v397
    %v399 = vmul.f32 %v394, %v398
    %vm400 = vweird.f32 %v392
    %vm401 = vweird.f32 %v394
    %vm402 = vmor %vm400, %vm401
    %v403 = vsel %vm402, %v394, %v399
    %v404 = vrsqrt.pop %v393
    %v405 = vmul.f32 %v404, %v393
    %v406 = vmul.f32 %v405, %v404
    %v407 = vmul.f32 0.5, %v406
    %v408 = vsub.f32 1.5, %v407
    %v409 = vmul.f32 %v404, %v408
    %vm410 = vweird.f32 %v393
    %vm411 = vweird.f32 %v404
    %vm412 = vmor %vm410, %vm411
    %v413 = vsel %vm412, %v404, %v409
    %v414 = vmul.f32 %v382, %v403
    %v415 = vmul.f32 %v384, %v413
    %416 = vst [vmem:[#allocation10] sm:$0xff] %v414
    %417 = vst [vmem:[#allocation10 + $0x8] sm:$0xff] %v415
    // Predicated region
    $region38: #{tpu_custom_call.1} parent=1 // pred_check
      _
    $region39: #{tpu_custom_call.1} parent=1 // pred_check_branch
      %419 = sbr.rel (0) target = $region41
    $region40: #{tpu_custom_call.1} parent=1 // pred_region
      %421 = vsyncadd [#allocation4], 0
      %s422 = sshll.u32 [#allocation10], 4
      %s423 = int_to_ptr.vmem [resolvable:$true] %s422
      %s424 = sshll.u32 %s5, 4
      %s425 = int_to_ptr.hbm [resolvable:$true] %s424
      %430 = dma.vmem_to_hbm [thread:$0]  %s423, 256, %s425, [#allocation4], 128, 128, 8
    $region41: #{tpu_custom_call.1} parent=1 // pred_fallthru
      _
    // Predicated region
    $region42: #{tpu_custom_call.1} parent=1 // pred_check
      _
    $region43: #{tpu_custom_call.1} parent=1 // pred_check_branch
      %432 = sbr.rel (0) target = $region45
    $region44: #{tpu_custom_call.1} parent=1 // pred_region
      %434 = dma.done [#allocation4], 256
    $region45: #{tpu_custom_call.1} parent=1 // pred_fallthru
      _
    %435 = vsyncpa [#allocation3], 1
    %436 = vsyncpa [#allocation6], 1
    %437 = vsyncpa [#allocation9], 1
    %438 = vsyncpa [#allocation4], 1

</llo_original>
